<compile_context>
chip_gen: v7x
topology: tpu7x:2x2x1
jax: 0.10.0
libtpu: 0.0.40
codegen_flags: <defaults>
</compile_context>

<pallas_src>
import functools

import jax
import jax.numpy as jnp
from jax import lax
import numpy as np
from jax.experimental import pallas as pl
from jax.experimental.pallas import tpu as pltpu

KSIZE = 11
NFILT = 64
KK = KSIZE * KSIZE            # 121 taps
KPAD = 128                    # taps zero-padded 121 -> 128 (lane / MXU alignment)
CHARBONNIER_EPS2 = 1e-3 ** 2


def _alex11_kernel(pd_ref, w_ref, out_ref, *, tile_rows):
    """One grid step = one row tile (all channel groups share the weight tile).

    pd_ref : (tile_rows, 128) bf16  im2col'ed (input - target) rows
    w_ref  : (128, 64)        bf16  shared filter matrix (VMEM-resident)
    out_ref: (1, 8, 64)       f32   per-tile vector partial Charbonnier sum
    """
    # conv(x) - conv(t) == conv(x - t): one MXU matmul, f32 accumulation.
    yd = jnp.dot(pd_ref[...], w_ref[...],
                 preferred_element_type=jnp.float32)          # (tile_rows, 64)
    charb = jnp.sqrt(yd * yd + CHARBONNIER_EPS2)              # VPU mul/add + EUP sqrt
    # Reduce only the major (sublane-group) axis: pure VALU slab adds, no
    # cross-lane XLU reduction, no broadcast store.  (tile_rows//8, 8, 64) is a
    # layout-trivial leading-dim split of (tile_rows, 64).
    p = jnp.sum(charb.reshape(tile_rows // 8, 8, NFILT), axis=0)   # (8, 64)
    out_ref[...] = p[None]


def _round_up(v, m):
    return (v + m - 1) // m * m


@functools.partial(jax.jit, static_argnames=("in_channels", "tile_m"))
def alex11_loss(x, t, conv_weight, *, in_channels, tile_m=16384):
    """x, t: (B, C, H, W) f32 NCHW; conv_weight: (64*C, 1, 11, 11) f32 (grouped).

    NOTE: relies on Alex11Loss's construction where the 64-filter bank is
    identical for every channel group (so a single weight tile is shared and the
    group axis folds into the row axis).  Not valid for arbitrary grouped weights.
    """
    B, C, H, W = x.shape
    assert C == in_channels
    assert conv_weight.shape == (NFILT * C, 1, KSIZE, KSIZE)
    Ho, Wo = H - KSIZE + 1, W - KSIZE + 1
    N = B * C                              # every (batch, group) pair is one image
    R = N * Ho * Wo                        # total output rows (valid positions)

    # Row tile: multiple of 16 (bf16 sublane packing), clipped for tiny inputs.
    tm = _round_up(min(tile_m, _round_up(R, 16)), 16)
    num_m = -(-R // tm)
    r_pad = num_m * tm

    # --- JAX glue: difference once, patches built once in final layout ---------
    d = (x - t).astype(jnp.bfloat16).reshape(N, H, W)
    zero = jnp.zeros((N, Ho, Wo), jnp.bfloat16)
    slabs = [d[:, ki:ki + Ho, kj:kj + Wo]
             for ki in range(KSIZE) for kj in range(KSIZE)]
    slabs += [zero] * (KPAD - KK)                     # fused 121 -> 128 tap pad
    pd = jnp.stack(slabs, axis=-1).reshape(R, KPAD)   # (R, 128), tap = ki*11 + kj
    pd = jnp.pad(pd, ((0, r_pad - R), (0, 0)))        # zero rows -> analytic eps

    # Shared filter bank: first group's 64 filters, taps padded in lockstep with pd.
    wk = conv_weight[:NFILT].reshape(NFILT, KK).T                     # (121, 64)
    wk = jnp.pad(wk, ((0, KPAD - KK), (0, 0))).astype(jnp.bfloat16)   # (128, 64)

    kernel = functools.partial(_alex11_kernel, tile_rows=tm)

    # --- Pallas hot path: matmul + Charbonnier + per-tile vector partial sums ---
    partials = pl.pallas_call(
        kernel,
        out_shape=jax.ShapeDtypeStruct((num_m, 8, NFILT), jnp.float32),
        grid_spec=pltpu.PrefetchScalarGridSpec(
            num_scalar_prefetch=0,
            grid=(num_m,),
            in_specs=[
                pl.BlockSpec((tm, KPAD), lambda m: (m, 0)),
                pl.BlockSpec((KPAD, NFILT), lambda m: (0, 0)),   # resident weights
            ],
            out_specs=pl.BlockSpec((1, 8, NFILT), lambda m: (m, 0, 0)),
        ),
        compiler_params=pltpu.CompilerParams(
            dimension_semantics=("parallel",),
            vmem_limit_bytes=32 * 1024 * 1024),
    )(pd, wk)

    # Epilogue: padded rows contribute exactly sqrt(eps^2) each -> subtract.
    eps = jnp.sqrt(jnp.float32(CHARBONNIER_EPS2))
    total = jnp.sum(partials) - jnp.float32((r_pad - R) * NFILT) * eps
    n_elems = R * NFILT                     # == B * (64*C) * Ho * Wo
    return total / n_elems


def make_alex11_weight(in_channels, key):
    """Deterministic synthetic stand-in for the alexnet-derived filter bank.

    Mirrors create_filter(): base f is (64, 1, 11, 11), each filter scaled so
    max |f[i]| == 1, filter 31 replaced by a center delta, then the bank is
    concatenated `in_channels` times (grouped conv, groups = in_channels).
    """
    f = jax.random.normal(key, (NFILT, 1, KSIZE, KSIZE), jnp.float32)
    f = f / jnp.max(jnp.abs(f), axis=(1, 2, 3), keepdims=True)
    delta = jnp.zeros((1, KSIZE, KSIZE), jnp.float32).at[0, KSIZE // 2, KSIZE // 2].set(1.0)
    f = f.at[31].set(delta)
    return jnp.concatenate([f for _ in range(in_channels)], axis=0)   # (64*C, 1, 11, 11)


def _reference_loss(x, t, conv_weight, in_channels):
    """Pure-JAX reference (lax grouped conv + Charbonnier mean), full f32."""
    dn = ('NCHW', 'OIHW', 'NCHW')
    y = lax.conv_general_dilated(x, conv_weight, (1, 1), 'VALID',
                                 dimension_numbers=dn,
                                 feature_group_count=in_channels)
    tt = lax.conv_general_dilated(t, conv_weight, (1, 1), 'VALID',
                                  dimension_numbers=dn,
                                  feature_group_count=in_channels)
    return jnp.mean(jnp.sqrt((y - tt) ** 2 + CHARBONNIER_EPS2))


if __name__ == "__main__":
    key = jax.random.PRNGKey(0)
    k_w, k_x, k_t = jax.random.split(key, 3)

    B, C, H, W = 2, 3, 17, 17          # in_channels must be 1 or 3
    weight = make_alex11_weight(C, k_w)
    x = jax.random.normal(k_x, (B, C, H, W), jnp.float32)
    t = jax.random.normal(k_t, (B, C, H, W), jnp.float32)

    ref = jax.block_until_ready(_reference_loss(x, t, weight, C))

    # Default (single) row tile; exercises the analytic tail correction
    # (B*C*Ho*Wo = 294 rows padded to 304).
    loss = jax.block_until_ready(alex11_loss(x, t, weight, in_channels=C))
    np.testing.assert_allclose(np.asarray(loss), np.asarray(ref),
                               rtol=5e-3, atol=1e-3)

    # Small tile: multi-step 1-D grid (5 tiles) + padded last tile.
    loss2 = jax.block_until_ready(alex11_loss(x, t, weight, in_channels=C, tile_m=64))
    np.testing.assert_allclose(np.asarray(loss2), np.asarray(ref),
                               rtol=5e-3, atol=1e-3)

    print("KERNEL_OK")
</pallas_src>

<mosaic_0001>
module attributes {stable_mosaic.version = 11 : i64} {
  func.func @_alex11_kernel(%arg0: i32, %arg1: memref<304x128xbf16, #tpu.memory_space<vmem>>, %arg2: memref<128x64xbf16, #tpu.memory_space<vmem>>, %arg3: memref<1x8x64xf32, #tpu.memory_space<vmem>>) attributes {dimension_semantics = [#tpu.dimension_semantics<parallel>], iteration_bounds = array<i64: 1>, scalar_prefetch = 0 : i64, scratch_operands = 0 : i64, tpu.core_type = #tpu.core_type<tc>, window_params = [{transform_indices = @transform_0, window_bounds = array<i64: 304, 128>}, {pipeline_mode = #tpu.pipeline_mode<synchronous>, transform_indices = @transform_1, window_bounds = array<i64: 128, 64>}, {transform_indices = @transform_2, window_bounds = array<i64: 1, 8, 64>}]} {
    %c0 = arith.constant 0 : index
    %c0_0 = arith.constant 0 : index
    %0 = vector.load %arg1[%c0, %c0_0] : memref<304x128xbf16, #tpu.memory_space<vmem>>, vector<304x128xbf16>
    %c0_1 = arith.constant 0 : index
    %c0_2 = arith.constant 0 : index
    %1 = vector.load %arg2[%c0_1, %c0_2] : memref<128x64xbf16, #tpu.memory_space<vmem>>, vector<128x64xbf16>
    %cst = arith.constant dense<0.000000e+00> : vector<304x64xf32>
    %2 = tpu.matmul %0, %1, %cst {dimension_numbers = #tpu.dot_dimension_numbers<[1], [0], [0], [1], [0, 0, 1, 1], [], []>} : vector<304x128xbf16>, vector<128x64xbf16>, vector<304x64xf32> -> vector<304x64xf32>
    %3 = arith.mulf %2, %2 : vector<304x64xf32>
    %cst_3 = arith.constant 9.99999997E-7 : f32
    %4 = vector.broadcast %cst_3 : f32 to vector<304x64xf32>
    %5 = arith.addf %3, %4 : vector<304x64xf32>
    %6 = math.sqrt %5 : vector<304x64xf32>
    %7 = vector.shape_cast %6 : vector<304x64xf32> to vector<38x8x64xf32>
    %cst_4 = arith.constant dense<0.000000e+00> : vector<8x64xf32>
    %8 = vector.multi_reduction <add>, %7, %cst_4 [0] : vector<38x8x64xf32> to vector<8x64xf32>
    %9 = vector.shape_cast %8 : vector<8x64xf32> to vector<1x8x64xf32>
    %c0_5 = arith.constant 0 : index
    %c0_6 = arith.constant 0 : index
    %c0_7 = arith.constant 0 : index
    %10 = vector.load %arg3[%c0_5, %c0_6, %c0_7] : memref<1x8x64xf32, #tpu.memory_space<vmem>>, vector<1x8x64xf32>
    tpu.vector_store %arg3[%c0_5, %c0_6, %c0_7], %9 {strides = array<i32>} : memref<1x8x64xf32, #tpu.memory_space<vmem>>, vector<1x8x64xf32>,
    return
  }
  func.func @transform_0(%arg0: i32) -> (i32, i32) {
    %c0_i32 = arith.constant 0 : i32
    %c0_i32_0 = arith.constant 0 : i32
    return %arg0, %c0_i32 : i32, i32
  }
  func.func @transform_1(%arg0: i32) -> (i32, i32) {
    %c0_i32 = arith.constant 0 : i32
    %c0_i32_0 = arith.constant 0 : i32
    %c0_i32_1 = arith.constant 0 : i32
    return %c0_i32, %c0_i32_0 : i32, i32
  }
  func.func @transform_2(%arg0: i32) -> (i32, i32, i32) {
    %c0_i32 = arith.constant 0 : i32
    %c0_i32_0 = arith.constant 0 : i32
    %c0_i32_1 = arith.constant 0 : i32
    return %arg0, %c0_i32, %c0_i32_0 : i32, i32, i32
  }
}

</mosaic_0001>

<llo_original>
// kernel: alex11_loss.1
$region0: #{alex11_loss.1}
  #allocation0 [shape = 'u32[]', space=smem, size = 0x4, offset = 0x4, fixed_abs, tag = 'smem constant byte address 0x4 - core index']
  #allocation1 [shape = 'u32[144,128]{1,0:T(1,128)}', space=vmem, size = 0x12000, scoped, tag = 'internal scratch']
  %s0 = inlined_call_operand.vmem [shape: bf16[304,128], index: 0, kind: input, shape index: {}]
  %s1 = inlined_call_operand.vmem [shape: bf16[128,64], index: 1, kind: input, shape index: {}]
  %s2 = inlined_call_operand.vmem [shape: f32[1,8,64], index: 2, kind: output, shape index: {}]
  %s3 = sld [smem:[#allocation0]]
  $region18: #{alex11_loss.1} parent=0
    _
  %s5 = ssub.s32 1, %s3
  %s6 = scalar_select 0, %s5, %s3
  // Predicated region
  $region2: #{alex11_loss.1} parent=0 // pred_check
    _
  $region3: #{alex11_loss.1} parent=0 // pred_check_branch
    %8 = sbr.rel (0) target = $region5
  $region4: #{alex11_loss.1} parent=0 // pred_region
    _
  $region5: #{alex11_loss.1} parent=0 // pred_fallthru
    _
  // Predicated region
  $region6: #{alex11_loss.1} parent=0 // pred_check
    _
  $region7: #{alex11_loss.1} parent=0 // pred_check_branch
    %10 = sbr.rel (0) target = $region9
  $region8: #{alex11_loss.1} parent=0 // pred_region
    _
  $region9: #{alex11_loss.1} parent=0 // pred_fallthru
    _
  %v12 = vld [vmem:[%s0] sm:$0xf]
  %v13 = vld [vmem:[%s0 + $0x4] sm:$0xf]
  %v14 = vld [vmem:[%s0 + $0x8] sm:$0xf]
  %v15 = vld [vmem:[%s0 + $0xc] sm:$0xf]
  %v16 = vld [vmem:[%s0 + $0x10] sm:$0xf]
  %v17 = vld [vmem:[%s0 + $0x14] sm:$0xf]
  %v18 = vld [vmem:[%s0 + $0x18] sm:$0xf]
  %v19 = vld [vmem:[%s0 + $0x1c] sm:$0xf]
  %v20 = vld [vmem:[%s0 + $0x20] sm:$0xf]
  %v21 = vld [vmem:[%s0 + $0x24] sm:$0xf]
  %v22 = vld [vmem:[%s0 + $0x28] sm:$0xf]
  %v23 = vld [vmem:[%s0 + $0x2c] sm:$0xf]
  %v24 = vld [vmem:[%s0 + $0x30] sm:$0xf]
  %v25 = vld [vmem:[%s0 + $0x34] sm:$0xf]
  %v26 = vld [vmem:[%s0 + $0x38] sm:$0xf]
  %v27 = vld [vmem:[%s0 + $0x3c] sm:$0xf]
  %v28 = vld [vmem:[%s0 + $0x40] sm:$0xf]
  %v29 = vld [vmem:[%s0 + $0x44] sm:$0xf]
  %v30 = vld [vmem:[%s0 + $0x48] sm:$0xf]
  %v31 = vld [vmem:[%s0 + $0x4c] sm:$0xf]
  %v32 = vld [vmem:[%s0 + $0x50] sm:$0xf]
  %v33 = vld [vmem:[%s0 + $0x54] sm:$0xf]
  %v34 = vld [vmem:[%s0 + $0x58] sm:$0xf]
  %v35 = vld [vmem:[%s0 + $0x5c] sm:$0xf]
  %v36 = vld [vmem:[%s0 + $0x60] sm:$0xf]
  %v37 = vld [vmem:[%s0 + $0x64] sm:$0xf]
  %v38 = vld [vmem:[%s0 + $0x68] sm:$0xf]
  %v39 = vld [vmem:[%s0 + $0x6c] sm:$0xf]
  %v40 = vld [vmem:[%s0 + $0x70] sm:$0xf]
  %v41 = vld [vmem:[%s0 + $0x74] sm:$0xf]
  %v42 = vld [vmem:[%s0 + $0x78] sm:$0xf]
  %v43 = vld [vmem:[%s0 + $0x7c] sm:$0xf]
  %v44 = vld [vmem:[%s0 + $0x80] sm:$0xf]
  %v45 = vld [vmem:[%s0 + $0x84] sm:$0xf]
  %v46 = vld [vmem:[%s0 + $0x88] sm:$0xf]
  %v47 = vld [vmem:[%s0 + $0x8c] sm:$0xf]
  %v48 = vld [vmem:[%s0 + $0x90] sm:$0xf]
  %v49 = vld [vmem:[%s0 + $0x94] sm:$0xf]
  %v50 = vld [vmem:[%s1] sm:$0xf]
  %v51 = vld [vmem:[%s1 + $0x4] sm:$0xf]
  %v52 = vld [vmem:[%s1 + $0x8] sm:$0xf]
  %v53 = vld [vmem:[%s1 + $0xc] sm:$0xf]
  %v54 = vld [vmem:[%s1 + $0x10] sm:$0xf]
  %v55 = vld [vmem:[%s1 + $0x14] sm:$0xf]
  %v56 = vld [vmem:[%s1 + $0x18] sm:$0xf]
  %v57 = vld [vmem:[%s1 + $0x1c] sm:$0xf]
  %v58 = vld [vmem:[%s1 + $0x20] sm:$0xf]
  %v59 = vld [vmem:[%s1 + $0x24] sm:$0xf]
  %v60 = vld [vmem:[%s1 + $0x28] sm:$0xf]
  %v61 = vld [vmem:[%s1 + $0x2c] sm:$0xf]
  %v62 = vld [vmem:[%s1 + $0x30] sm:$0xf]
  %v63 = vld [vmem:[%s1 + $0x34] sm:$0xf]
  %v64 = vld [vmem:[%s1 + $0x38] sm:$0xf]
  %v65 = vld [vmem:[%s1 + $0x3c] sm:$0xf]
  %v104 = vunpack.c.l.b16 %v12
  %v105 = vunpack.c.l.b16 %v13
  %v106 = vunpack.c.l.b16 %v14
  %v107 = vunpack.c.l.b16 %v15
  %v108 = vunpack.c.l.b16 %v16
  %v109 = vunpack.c.l.b16 %v17
  %v110 = vunpack.c.l.b16 %v18
  %v111 = vunpack.c.l.b16 %v19
  %v112 = vunpack.c.l.b16 %v20
  %v113 = vunpack.c.l.b16 %v21
  %v114 = vunpack.c.l.b16 %v22
  %v115 = vunpack.c.l.b16 %v23
  %v116 = vunpack.c.l.b16 %v24
  %v117 = vunpack.c.l.b16 %v25
  %v118 = vunpack.c.l.b16 %v26
  %v119 = vunpack.c.l.b16 %v27
  %v120 = vunpack.c.l.b16 %v28
  %v121 = vunpack.c.l.b16 %v29
  %v122 = vunpack.c.l.b16 %v30
  %v123 = vunpack.c.l.b16 %v31
  %v124 = vunpack.c.l.b16 %v32
  %v125 = vunpack.c.l.b16 %v33
  %v126 = vunpack.c.l.b16 %v34
  %v127 = vunpack.c.l.b16 %v35
  %v128 = vunpack.c.l.b16 %v36
  %v129 = vunpack.c.l.b16 %v37
  %v130 = vunpack.c.l.b16 %v38
  %v131 = vunpack.c.l.b16 %v39
  %v132 = vunpack.c.l.b16 %v40
  %v133 = vunpack.c.l.b16 %v41
  %v134 = vunpack.c.l.b16 %v42
  %v135 = vunpack.c.l.b16 %v43
  %v136 = vunpack.c.l.b16 %v44
  %v137 = vunpack.c.l.b16 %v45
  %v138 = vunpack.c.l.b16 %v46
  %v139 = vunpack.c.l.b16 %v47
  %v140 = vunpack.c.l.b16 %v48
  %v141 = vunpack.c.l.b16 %v49
  %v142 = vpack.c.b16 %v105, %v104
  %v143 = vpack.c.b16 %v107, %v106
  %v144 = vpack.c.b16 %v109, %v108
  %v145 = vpack.c.b16 %v111, %v110
  %v146 = vpack.c.b16 %v113, %v112
  %v147 = vpack.c.b16 %v115, %v114
  %v148 = vpack.c.b16 %v117, %v116
  %v149 = vpack.c.b16 %v119, %v118
  %v150 = vpack.c.b16 %v121, %v120
  %v151 = vpack.c.b16 %v123, %v122
  %v152 = vpack.c.b16 %v125, %v124
  %v153 = vpack.c.b16 %v127, %v126
  %v154 = vpack.c.b16 %v129, %v128
  %v155 = vpack.c.b16 %v131, %v130
  %v156 = vpack.c.b16 %v133, %v132
  %v157 = vpack.c.b16 %v135, %v134
  %v158 = vpack.c.b16 %v137, %v136
  %v159 = vpack.c.b16 %v139, %v138
  %v160 = vpack.c.b16 %v141, %v140
  %v196 = vunpack.c.l.b16 %v50
  %v197 = vunpack.c.l.b16 %v51
  %v198 = vunpack.c.l.b16 %v52
  %v199 = vunpack.c.l.b16 %v53
  %v200 = vunpack.c.l.b16 %v54
  %v201 = vunpack.c.l.b16 %v55
  %v202 = vunpack.c.l.b16 %v56
  %v203 = vunpack.c.l.b16 %v57
  %v204 = vunpack.c.l.b16 %v58
  %v205 = vunpack.c.l.b16 %v59
  %v206 = vunpack.c.l.b16 %v60
  %v207 = vunpack.c.l.b16 %v61
  %v208 = vunpack.c.l.b16 %v62
  %v209 = vunpack.c.l.b16 %v63
  %v210 = vunpack.c.l.b16 %v64
  %v211 = vunpack.c.l.b16 %v65
  %v212 = vpack.c.b16 %v197, %v196
  %v213 = vpack.c.b16 %v199, %v198
  %v214 = vpack.c.b16 %v201, %v200
  %v215 = vpack.c.b16 %v203, %v202
  %v216 = vpack.c.b16 %v205, %v204
  %v217 = vpack.c.b16 %v207, %v206
  %v218 = vpack.c.b16 %v209, %v208
  %v219 = vpack.c.b16 %v211, %v210
  %228 = vmatprep.subr.bf16.mxu0 0
  %229 = vmatpush1.bf16.msra.mxu0 %v212
  %230 = vmatprep.subr.bf16.mxu0 0
  %231 = vmatpush1.bf16.msra.mxu0 %v213
  %232 = vmatprep.subr.bf16.mxu0 0
  %233 = vmatpush1.bf16.msra.mxu0 %v214
  %234 = vmatprep.subr.bf16.mxu0 0
  %235 = vmatpush1.bf16.msra.mxu0 %v215
  %236 = vmatprep.subr.bf16.mxu0 0
  %237 = vmatpush1.bf16.msra.mxu0 %v216
  %238 = vmatprep.subr.bf16.mxu0 0
  %239 = vmatpush1.bf16.msra.mxu0 %v217
  %240 = vmatprep.subr.bf16.mxu0 0
  %241 = vmatpush1.bf16.msra.mxu0 %v218
  %242 = vmatprep.subr.bf16.mxu0 0
  %243 = vmatpush1.bf16.msra.mxu0 %v219
  %244 = vmatprep.subr.bf16.mxu0 0
  %245 = vmatpush1.bf16.msra.mxu0 0
  %246 = vmatprep.subr.bf16.mxu0 0
  %247 = vmatpush1.bf16.msra.mxu0 0
  %248 = vmatprep.subr.bf16.mxu0 0
  %249 = vmatpush1.bf16.msra.mxu0 0
  %250 = vmatprep.subr.bf16.mxu0 0
  %251 = vmatpush1.bf16.msra.mxu0 0
  %252 = vmatprep.subr.bf16.mxu0 0
  %253 = vmatpush1.bf16.msra.mxu0 0
  %254 = vmatprep.subr.bf16.mxu0 0
  %255 = vmatpush1.bf16.msra.mxu0 0
  %256 = vmatprep.subr.bf16.mxu0 0
  %257 = vmatpush1.bf16.msra.mxu0 0
  %258 = vmatprep.subr.bf16.mxu0 0
  %259 = vmatpush1.bf16.msra.mxu0 0
  %260 = vmatprep.mubr.bf16.mxu0 0
  %261 = vmatmul.mubr.bf16.gmra.mrb[0].mxu0 %v142
  %v262 = vpop.f32.mrb[0].mxu0
  %v263 = vadd.f32 0.0, %v262
  %v264 = vpop.f32.mrb[0].mxu0
  %v265 = vpop.f32.mrb[0].mxu0
  %v266 = vadd.f32 0.0, %v265
  %v267 = vpop.f32.mrb[0].mxu0
  %268 = vmatprep.mubr.bf16.mxu0 0
  %269 = vmatmul.mubr.bf16.gmra.mrb[0].mxu0 %v143
  %v270 = vpop.f32.mrb[0].mxu0
  %v271 = vadd.f32 0.0, %v270
  %v272 = vpop.f32.mrb[0].mxu0
  %v273 = vpop.f32.mrb[0].mxu0
  %v274 = vadd.f32 0.0, %v273
  %v275 = vpop.f32.mrb[0].mxu0
  %276 = vmatprep.mubr.bf16.mxu0 0
  %277 = vmatmul.mubr.bf16.gmra.mrb[0].mxu0 %v144
  %v278 = vpop.f32.mrb[0].mxu0
  %v279 = vadd.f32 0.0, %v278
  %v280 = vpop.f32.mrb[0].mxu0
  %v281 = vpop.f32.mrb[0].mxu0
  %v282 = vadd.f32 0.0, %v281
  %v283 = vpop.f32.mrb[0].mxu0
  %284 = vmatprep.mubr.bf16.mxu0 0
  %285 = vmatmul.mubr.bf16.gmra.mrb[0].mxu0 %v145
  %v286 = vpop.f32.mrb[0].mxu0
  %v287 = vadd.f32 0.0, %v286
  %v288 = vpop.f32.mrb[0].mxu0
  %v289 = vpop.f32.mrb[0].mxu0
  %v290 = vadd.f32 0.0, %v289
  %v291 = vpop.f32.mrb[0].mxu0
  %292 = vmatprep.mubr.bf16.mxu0 0
  %293 = vmatmul.mubr.bf16.gmra.mrb[0].mxu0 %v146
  %v294 = vpop.f32.mrb[0].mxu0
  %v295 = vadd.f32 0.0, %v294
  %v296 = vpop.f32.mrb[0].mxu0
  %v297 = vpop.f32.mrb[0].mxu0
  %v298 = vadd.f32 0.0, %v297
  %v299 = vpop.f32.mrb[0].mxu0
  %300 = vmatprep.mubr.bf16.mxu0 0
  %301 = vmatmul.mubr.bf16.gmra.mrb[0].mxu0 %v147
  %v302 = vpop.f32.mrb[0].mxu0
  %v303 = vadd.f32 0.0, %v302
  %v304 = vpop.f32.mrb[0].mxu0
  %v305 = vpop.f32.mrb[0].mxu0
  %v306 = vadd.f32 0.0, %v305
  %v307 = vpop.f32.mrb[0].mxu0
  %308 = vmatprep.mubr.bf16.mxu0 0
  %309 = vmatmul.mubr.bf16.gmra.mrb[0].mxu0 %v148
  %v310 = vpop.f32.mrb[0].mxu0
  %v311 = vadd.f32 0.0, %v310
  %v312 = vpop.f32.mrb[0].mxu0
  %v313 = vpop.f32.mrb[0].mxu0
  %v314 = vadd.f32 0.0, %v313
  %v315 = vpop.f32.mrb[0].mxu0
  %316 = vmatprep.mubr.bf16.mxu0 0
  %317 = vmatmul.mubr.bf16.gmra.mrb[0].mxu0 %v149
  %v318 = vpop.f32.mrb[0].mxu0
  %v319 = vadd.f32 0.0, %v318
  %v320 = vpop.f32.mrb[0].mxu0
  %v321 = vpop.f32.mrb[0].mxu0
  %v322 = vadd.f32 0.0, %v321
  %v323 = vpop.f32.mrb[0].mxu0
  %324 = vmatprep.mubr.bf16.mxu0 0
  %325 = vmatmul.mubr.bf16.gmra.mrb[0].mxu0 %v150
  %v326 = vpop.f32.mrb[0].mxu0
  %v327 = vadd.f32 0.0, %v326
  %v328 = vpop.f32.mrb[0].mxu0
  %v329 = vpop.f32.mrb[0].mxu0
  %v330 = vadd.f32 0.0, %v329
  %v331 = vpop.f32.mrb[0].mxu0
  %332 = vmatprep.mubr.bf16.mxu0 0
  %333 = vmatmul.mubr.bf16.gmra.mrb[0].mxu0 %v151
  %v334 = vpop.f32.mrb[0].mxu0
  %v335 = vadd.f32 0.0, %v334
  %v336 = vpop.f32.mrb[0].mxu0
  %v337 = vpop.f32.mrb[0].mxu0
  %v338 = vadd.f32 0.0, %v337
  %v339 = vpop.f32.mrb[0].mxu0
  %340 = vmatprep.mubr.bf16.mxu0 0
  %341 = vmatmul.mubr.bf16.gmra.mrb[0].mxu0 %v152
  %v342 = vpop.f32.mrb[0].mxu0
  %v343 = vadd.f32 0.0, %v342
  %v344 = vpop.f32.mrb[0].mxu0
  %v345 = vpop.f32.mrb[0].mxu0
  %v346 = vadd.f32 0.0, %v345
  %v347 = vpop.f32.mrb[0].mxu0
  %348 = vmatprep.mubr.bf16.mxu0 0
  %349 = vmatmul.mubr.bf16.gmra.mrb[0].mxu0 %v153
  %v350 = vpop.f32.mrb[0].mxu0
  %v351 = vadd.f32 0.0, %v350
  %v352 = vpop.f32.mrb[0].mxu0
  %v353 = vpop.f32.mrb[0].mxu0
  %v354 = vadd.f32 0.0, %v353
  %v355 = vpop.f32.mrb[0].mxu0
  %356 = vmatprep.mubr.bf16.mxu0 0
  %357 = vmatmul.mubr.bf16.gmra.mrb[0].mxu0 %v154
  %v358 = vpop.f32.mrb[0].mxu0
  %v359 = vadd.f32 0.0, %v358
  %v360 = vpop.f32.mrb[0].mxu0
  %v361 = vpop.f32.mrb[0].mxu0
  %v362 = vadd.f32 0.0, %v361
  %v363 = vpop.f32.mrb[0].mxu0
  %364 = vmatprep.mubr.bf16.mxu0 0
  %365 = vmatmul.mubr.bf16.gmra.mrb[0].mxu0 %v155
  %v366 = vpop.f32.mrb[0].mxu0
  %v367 = vadd.f32 0.0, %v366
  %v368 = vpop.f32.mrb[0].mxu0
  %v369 = vpop.f32.mrb[0].mxu0
  %v370 = vadd.f32 0.0, %v369
  %v371 = vpop.f32.mrb[0].mxu0
  %372 = vmatprep.mubr.bf16.mxu0 0
  %373 = vmatmul.mubr.bf16.gmra.mrb[0].mxu0 %v156
  %v374 = vpop.f32.mrb[0].mxu0
  %v375 = vadd.f32 0.0, %v374
  %v376 = vpop.f32.mrb[0].mxu0
  %v377 = vpop.f32.mrb[0].mxu0
  %v378 = vadd.f32 0.0, %v377
  %v379 = vpop.f32.mrb[0].mxu0
  %380 = vmatprep.mubr.bf16.mxu0 0
  %381 = vmatmul.mubr.bf16.gmra.mrb[0].mxu0 %v157
  %v382 = vpop.f32.mrb[0].mxu0
  %v383 = vadd.f32 0.0, %v382
  %v384 = vpop.f32.mrb[0].mxu0
  %v385 = vpop.f32.mrb[0].mxu0
  %v386 = vadd.f32 0.0, %v385
  %v387 = vpop.f32.mrb[0].mxu0
  %388 = vmatprep.mubr.bf16.mxu0 0
  %389 = vmatmul.mubr.bf16.gmra.mrb[0].mxu0 %v158
  %v390 = vpop.f32.mrb[0].mxu0
  %v391 = vadd.f32 0.0, %v390
  %v392 = vpop.f32.mrb[0].mxu0
  %v393 = vpop.f32.mrb[0].mxu0
  %v394 = vadd.f32 0.0, %v393
  %v395 = vpop.f32.mrb[0].mxu0
  %396 = vmatprep.mubr.bf16.mxu0 0
  %397 = vmatmul.mubr.bf16.gmra.mrb[0].mxu0 %v159
  %v398 = vpop.f32.mrb[0].mxu0
  %v399 = vadd.f32 0.0, %v398
  %v400 = vpop.f32.mrb[0].mxu0
  %v401 = vpop.f32.mrb[0].mxu0
  %v402 = vadd.f32 0.0, %v401
  %v403 = vpop.f32.mrb[0].mxu0
  %404 = vmatprep.mubr.bf16.mxu0 0
  %405 = vmatmul.mubr.bf16.gmra.mrb[0].mxu0 %v160
  %v406 = vpop.f32.mrb[0].mxu0
  %v407 = vadd.f32 0.0, %v406
  %v408 = vpop.f32.mrb[0].mxu0
  %v409 = vpop.f32.mrb[0].mxu0
  %v410 = vadd.f32 0.0, %v409
  %v411 = vpop.f32.mrb[0].mxu0
  %412 = vdwg.mxu0
  %v413 = vmul.f32 %v263, %v263
  %v414 = vmul.f32 %v266, %v266
  %v415 = vmul.f32 %v271, %v271
  %v416 = vmul.f32 %v274, %v274
  %v417 = vmul.f32 %v279, %v279
  %v418 = vmul.f32 %v282, %v282
  %v419 = vmul.f32 %v287, %v287
  %v420 = vmul.f32 %v290, %v290
  %v421 = vmul.f32 %v295, %v295
  %v422 = vmul.f32 %v298, %v298
  %v423 = vmul.f32 %v303, %v303
  %v424 = vmul.f32 %v306, %v306
  %v425 = vmul.f32 %v311, %v311
  %v426 = vmul.f32 %v314, %v314
  %v427 = vmul.f32 %v319, %v319
  %v428 = vmul.f32 %v322, %v322
  %v429 = vmul.f32 %v327, %v327
  %v430 = vmul.f32 %v330, %v330
  %v431 = vmul.f32 %v335, %v335
  %v432 = vmul.f32 %v338, %v338
  %v433 = vmul.f32 %v343, %v343
  %v434 = vmul.f32 %v346, %v346
  %v435 = vmul.f32 %v351, %v351
  %v436 = vmul.f32 %v354, %v354
  %v437 = vmul.f32 %v359, %v359
  %v438 = vmul.f32 %v362, %v362
  %v439 = vmul.f32 %v367, %v367
  %v440 = vmul.f32 %v370, %v370
  %v441 = vmul.f32 %v375, %v375
  %v442 = vmul.f32 %v378, %v378
  %v443 = vmul.f32 %v383, %v383
  %v444 = vmul.f32 %v386, %v386
  %v445 = vmul.f32 %v391, %v391
  %v446 = vmul.f32 %v394, %v394
  %v447 = vmul.f32 %v399, %v399
  %v448 = vmul.f32 %v402, %v402
  %v449 = vmul.f32 %v407, %v407
  %v450 = vmul.f32 %v410, %v410
  %v451 = vadd.f32 %v413, 1e-06
  %v452 = vadd.f32 %v414, 1e-06
  %v453 = vadd.f32 %v415, 1e-06
  %v454 = vadd.f32 %v416, 1e-06
  %v455 = vadd.f32 %v417, 1e-06
  %v456 = vadd.f32 %v418, 1e-06
  %v457 = vadd.f32 %v419, 1e-06
  %v458 = vadd.f32 %v420, 1e-06
  %v459 = vadd.f32 %v421, 1e-06
  %v460 = vadd.f32 %v422, 1e-06
  %v461 = vadd.f32 %v423, 1e-06
  %v462 = vadd.f32 %v424, 1e-06
  %v463 = vadd.f32 %v425, 1e-06
  %v464 = vadd.f32 %v426, 1e-06
  %v465 = vadd.f32 %v427, 1e-06
  %v466 = vadd.f32 %v428, 1e-06
  %v467 = vadd.f32 %v429, 1e-06
  %v468 = vadd.f32 %v430, 1e-06
  %v469 = vadd.f32 %v431, 1e-06
  %v470 = vadd.f32 %v432, 1e-06
  %v471 = vadd.f32 %v433, 1e-06
  %v472 = vadd.f32 %v434, 1e-06
  %v473 = vadd.f32 %v435, 1e-06
  %v474 = vadd.f32 %v436, 1e-06
  %v475 = vadd.f32 %v437, 1e-06
  %v476 = vadd.f32 %v438, 1e-06
  %v477 = vadd.f32 %v439, 1e-06
  %v478 = vadd.f32 %v440, 1e-06
  %v479 = vadd.f32 %v441, 1e-06
  %v480 = vadd.f32 %v442, 1e-06
  %v481 = vadd.f32 %v443, 1e-06
  %v482 = vadd.f32 %v444, 1e-06
  %v483 = vadd.f32 %v445, 1e-06
  %v484 = vadd.f32 %v446, 1e-06
  %v485 = vadd.f32 %v447, 1e-06
  %v486 = vadd.f32 %v448, 1e-06
  %v487 = vadd.f32 %v449, 1e-06
  %v488 = vadd.f32 %v450, 1e-06
  %v489 = vrsqrt.pop %v451
  %v490 = vmul.f32 %v451, %v489
  %vm491 = vcmp.eq.f32.partialorder %v451, inf
  %v492 = vsel %vm491, %v451, %v490
  %vm493 = vcmp.eq.f32.partialorder %v451, 0.0
  %v494 = vand.u32 %v451, 2147483648
  %v495 = vsel %vm493, %v494, %v492
  %v496 = vrsqrt.pop %v452
  %v497 = vmul.f32 %v452, %v496
  %vm498 = vcmp.eq.f32.partialorder %v452, inf
  %v499 = vsel %vm498, %v452, %v497
  %vm500 = vcmp.eq.f32.partialorder %v452, 0.0
  %v501 = vand.u32 %v452, 2147483648
  %v502 = vsel %vm500, %v501, %v499
  %v503 = vrsqrt.pop %v453
  %v504 = vmul.f32 %v453, %v503
  %vm505 = vcmp.eq.f32.partialorder %v453, inf
  %v506 = vsel %vm505, %v453, %v504
  %vm507 = vcmp.eq.f32.partialorder %v453, 0.0
  %v508 = vand.u32 %v453, 2147483648
  %v509 = vsel %vm507, %v508, %v506
  %v510 = vrsqrt.pop %v454
  %v511 = vmul.f32 %v454, %v510
  %vm512 = vcmp.eq.f32.partialorder %v454, inf
  %v513 = vsel %vm512, %v454, %v511
  %vm514 = vcmp.eq.f32.partialorder %v454, 0.0
  %v515 = vand.u32 %v454, 2147483648
  %v516 = vsel %vm514, %v515, %v513
  %v517 = vrsqrt.pop %v455
  %v518 = vmul.f32 %v455, %v517
  %vm519 = vcmp.eq.f32.partialorder %v455, inf
  %v520 = vsel %vm519, %v455, %v518
  %vm521 = vcmp.eq.f32.partialorder %v455, 0.0
  %v522 = vand.u32 %v455, 2147483648
  %v523 = vsel %vm521, %v522, %v520
  %v524 = vrsqrt.pop %v456
  %v525 = vmul.f32 %v456, %v524
  %vm526 = vcmp.eq.f32.partialorder %v456, inf
  %v527 = vsel %vm526, %v456, %v525
  %vm528 = vcmp.eq.f32.partialorder %v456, 0.0
  %v529 = vand.u32 %v456, 2147483648
  %v530 = vsel %vm528, %v529, %v527
  %v531 = vrsqrt.pop %v457
  %v532 = vmul.f32 %v457, %v531
  %vm533 = vcmp.eq.f32.partialorder %v457, inf
  %v534 = vsel %vm533, %v457, %v532
  %vm535 = vcmp.eq.f32.partialorder %v457, 0.0
  %v536 = vand.u32 %v457, 2147483648
  %v537 = vsel %vm535, %v536, %v534
  %v538 = vrsqrt.pop %v458
  %v539 = vmul.f32 %v458, %v538
  %vm540 = vcmp.eq.f32.partialorder %v458, inf
  %v541 = vsel %vm540, %v458, %v539
  %vm542 = vcmp.eq.f32.partialorder %v458, 0.0
  %v543 = vand.u32 %v458, 2147483648
  %v544 = vsel %vm542, %v543, %v541
  %v545 = vrsqrt.pop %v459
  %v546 = vmul.f32 %v459, %v545
  %vm547 = vcmp.eq.f32.partialorder %v459, inf
  %v548 = vsel %vm547, %v459, %v546
  %vm549 = vcmp.eq.f32.partialorder %v459, 0.0
  %v550 = vand.u32 %v459, 2147483648
  %v551 = vsel %vm549, %v550, %v548
  %v552 = vrsqrt.pop %v460
  %v553 = vmul.f32 %v460, %v552
  %vm554 = vcmp.eq.f32.partialorder %v460, inf
  %v555 = vsel %vm554, %v460, %v553
  %vm556 = vcmp.eq.f32.partialorder %v460, 0.0
  %v557 = vand.u32 %v460, 2147483648
  %v558 = vsel %vm556, %v557, %v555
  %v559 = vrsqrt.pop %v461
  %v560 = vmul.f32 %v461, %v559
  %vm561 = vcmp.eq.f32.partialorder %v461, inf
  %v562 = vsel %vm561, %v461, %v560
  %vm563 = vcmp.eq.f32.partialorder %v461, 0.0
  %v564 = vand.u32 %v461, 2147483648
  %v565 = vsel %vm563, %v564, %v562
  %v566 = vrsqrt.pop %v462
  %v567 = vmul.f32 %v462, %v566
  %vm568 = vcmp.eq.f32.partialorder %v462, inf
  %v569 = vsel %vm568, %v462, %v567
  %vm570 = vcmp.eq.f32.partialorder %v462, 0.0
  %v571 = vand.u32 %v462, 2147483648
  %v572 = vsel %vm570, %v571, %v569
  %v573 = vrsqrt.pop %v463
  %v574 = vmul.f32 %v463, %v573
  %vm575 = vcmp.eq.f32.partialorder %v463, inf
  %v576 = vsel %vm575, %v463, %v574
  %vm577 = vcmp.eq.f32.partialorder %v463, 0.0
  %v578 = vand.u32 %v463, 2147483648
  %v579 = vsel %vm577, %v578, %v576
  %v580 = vrsqrt.pop %v464
  %v581 = vmul.f32 %v464, %v580
  %vm582 = vcmp.eq.f32.partialorder %v464, inf
  %v583 = vsel %vm582, %v464, %v581
  %vm584 = vcmp.eq.f32.partialorder %v464, 0.0
  %v585 = vand.u32 %v464, 2147483648
  %v586 = vsel %vm584, %v585, %v583
  %v587 = vrsqrt.pop %v465
  %v588 = vmul.f32 %v465, %v587
  %vm589 = vcmp.eq.f32.partialorder %v465, inf
  %v590 = vsel %vm589, %v465, %v588
  %vm591 = vcmp.eq.f32.partialorder %v465, 0.0
  %v592 = vand.u32 %v465, 2147483648
  %v593 = vsel %vm591, %v592, %v590
  %v594 = vrsqrt.pop %v466
  %v595 = vmul.f32 %v466, %v594
  %vm596 = vcmp.eq.f32.partialorder %v466, inf
  %v597 = vsel %vm596, %v466, %v595
  %vm598 = vcmp.eq.f32.partialorder %v466, 0.0
  %v599 = vand.u32 %v466, 2147483648
  %v600 = vsel %vm598, %v599, %v597
  %v601 = vrsqrt.pop %v467
  %v602 = vmul.f32 %v467, %v601
  %vm603 = vcmp.eq.f32.partialorder %v467, inf
  %v604 = vsel %vm603, %v467, %v602
  %vm605 = vcmp.eq.f32.partialorder %v467, 0.0
  %v606 = vand.u32 %v467, 2147483648
  %v607 = vsel %vm605, %v606, %v604
  %v608 = vrsqrt.pop %v468
  %v609 = vmul.f32 %v468, %v608
  %vm610 = vcmp.eq.f32.partialorder %v468, inf
  %v611 = vsel %vm610, %v468, %v609
  %vm612 = vcmp.eq.f32.partialorder %v468, 0.0
  %v613 = vand.u32 %v468, 2147483648
  %v614 = vsel %vm612, %v613, %v611
  %v615 = vrsqrt.pop %v469
  %v616 = vmul.f32 %v469, %v615
  %vm617 = vcmp.eq.f32.partialorder %v469, inf
  %v618 = vsel %vm617, %v469, %v616
  %vm619 = vcmp.eq.f32.partialorder %v469, 0.0
  %v620 = vand.u32 %v469, 2147483648
  %v621 = vsel %vm619, %v620, %v618
  %v622 = vrsqrt.pop %v470
  %v623 = vmul.f32 %v470, %v622
  %vm624 = vcmp.eq.f32.partialorder %v470, inf
  %v625 = vsel %vm624, %v470, %v623
  %vm626 = vcmp.eq.f32.partialorder %v470, 0.0
  %v627 = vand.u32 %v470, 2147483648
  %v628 = vsel %vm626, %v627, %v625
  %v629 = vrsqrt.pop %v471
  %v630 = vmul.f32 %v471, %v629
  %vm631 = vcmp.eq.f32.partialorder %v471, inf
  %v632 = vsel %vm631, %v471, %v630
  %vm633 = vcmp.eq.f32.partialorder %v471, 0.0
  %v634 = vand.u32 %v471, 2147483648
  %v635 = vsel %vm633, %v634, %v632
  %v636 = vrsqrt.pop %v472
  %v637 = vmul.f32 %v472, %v636
  %vm638 = vcmp.eq.f32.partialorder %v472, inf
  %v639 = vsel %vm638, %v472, %v637
  %vm640 = vcmp.eq.f32.partialorder %v472, 0.0
  %v641 = vand.u32 %v472, 2147483648
  %v642 = vsel %vm640, %v641, %v639
  %v643 = vrsqrt.pop %v473
  %v644 = vmul.f32 %v473, %v643
  %vm645 = vcmp.eq.f32.partialorder %v473, inf
  %v646 = vsel %vm645, %v473, %v644
  %vm647 = vcmp.eq.f32.partialorder %v473, 0.0
  %v648 = vand.u32 %v473, 2147483648
  %v649 = vsel %vm647, %v648, %v646
  %v650 = vrsqrt.pop %v474
  %v651 = vmul.f32 %v474, %v650
  %vm652 = vcmp.eq.f32.partialorder %v474, inf
  %v653 = vsel %vm652, %v474, %v651
  %vm654 = vcmp.eq.f32.partialorder %v474, 0.0
  %v655 = vand.u32 %v474, 2147483648
  %v656 = vsel %vm654, %v655, %v653
  %v657 = vrsqrt.pop %v475
  %v658 = vmul.f32 %v475, %v657
  %vm659 = vcmp.eq.f32.partialorder %v475, inf
  %v660 = vsel %vm659, %v475, %v658
  %vm661 = vcmp.eq.f32.partialorder %v475, 0.0
  %v662 = vand.u32 %v475, 2147483648
  %v663 = vsel %vm661, %v662, %v660
  %v664 = vrsqrt.pop %v476
  %v665 = vmul.f32 %v476, %v664
  %vm666 = vcmp.eq.f32.partialorder %v476, inf
  %v667 = vsel %vm666, %v476, %v665
  %vm668 = vcmp.eq.f32.partialorder %v476, 0.0
  %v669 = vand.u32 %v476, 2147483648
  %v670 = vsel %vm668, %v669, %v667
  %v671 = vrsqrt.pop %v477
  %v672 = vmul.f32 %v477, %v671
  %vm673 = vcmp.eq.f32.partialorder %v477, inf
  %v674 = vsel %vm673, %v477, %v672
  %vm675 = vcmp.eq.f32.partialorder %v477, 0.0
  %v676 = vand.u32 %v477, 2147483648
  %v677 = vsel %vm675, %v676, %v674
  %v678 = vrsqrt.pop %v478
  %v679 = vmul.f32 %v478, %v678
  %vm680 = vcmp.eq.f32.partialorder %v478, inf
  %v681 = vsel %vm680, %v478, %v679
  %vm682 = vcmp.eq.f32.partialorder %v478, 0.0
  %v683 = vand.u32 %v478, 2147483648
  %v684 = vsel %vm682, %v683, %v681
  %v685 = vrsqrt.pop %v479
  %v686 = vmul.f32 %v479, %v685
  %vm687 = vcmp.eq.f32.partialorder %v479, inf
  %v688 = vsel %vm687, %v479, %v686
  %vm689 = vcmp.eq.f32.partialorder %v479, 0.0
  %v690 = vand.u32 %v479, 2147483648
  %v691 = vsel %vm689, %v690, %v688
  %v692 = vrsqrt.pop %v480
  %v693 = vmul.f32 %v480, %v692
  %vm694 = vcmp.eq.f32.partialorder %v480, inf
  %v695 = vsel %vm694, %v480, %v693
  %vm696 = vcmp.eq.f32.partialorder %v480, 0.0
  %v697 = vand.u32 %v480, 2147483648
  %v698 = vsel %vm696, %v697, %v695
  %v699 = vrsqrt.pop %v481
  %v700 = vmul.f32 %v481, %v699
  %vm701 = vcmp.eq.f32.partialorder %v481, inf
  %v702 = vsel %vm701, %v481, %v700
  %vm703 = vcmp.eq.f32.partialorder %v481, 0.0
  %v704 = vand.u32 %v481, 2147483648
  %v705 = vsel %vm703, %v704, %v702
  %v706 = vrsqrt.pop %v482
  %v707 = vmul.f32 %v482, %v706
  %vm708 = vcmp.eq.f32.partialorder %v482, inf
  %v709 = vsel %vm708, %v482, %v707
  %vm710 = vcmp.eq.f32.partialorder %v482, 0.0
  %v711 = vand.u32 %v482, 2147483648
  %v712 = vsel %vm710, %v711, %v709
  %v713 = vrsqrt.pop %v483
  %v714 = vmul.f32 %v483, %v713
  %vm715 = vcmp.eq.f32.partialorder %v483, inf
  %v716 = vsel %vm715, %v483, %v714
  %vm717 = vcmp.eq.f32.partialorder %v483, 0.0
  %v718 = vand.u32 %v483, 2147483648
  %v719 = vsel %vm717, %v718, %v716
  %v720 = vrsqrt.pop %v484
  %v721 = vmul.f32 %v484, %v720
  %vm722 = vcmp.eq.f32.partialorder %v484, inf
  %v723 = vsel %vm722, %v484, %v721
  %vm724 = vcmp.eq.f32.partialorder %v484, 0.0
  %v725 = vand.u32 %v484, 2147483648
  %v726 = vsel %vm724, %v725, %v723
  %v727 = vrsqrt.pop %v485
  %v728 = vmul.f32 %v485, %v727
  %vm729 = vcmp.eq.f32.partialorder %v485, inf
  %v730 = vsel %vm729, %v485, %v728
  %vm731 = vcmp.eq.f32.partialorder %v485, 0.0
  %v732 = vand.u32 %v485, 2147483648
  %v733 = vsel %vm731, %v732, %v730
  %v734 = vrsqrt.pop %v486
  %v735 = vmul.f32 %v486, %v734
  %vm736 = vcmp.eq.f32.partialorder %v486, inf
  %v737 = vsel %vm736, %v486, %v735
  %vm738 = vcmp.eq.f32.partialorder %v486, 0.0
  %v739 = vand.u32 %v486, 2147483648
  %v740 = vsel %vm738, %v739, %v737
  %v741 = vrsqrt.pop %v487
  %v742 = vmul.f32 %v487, %v741
  %vm743 = vcmp.eq.f32.partialorder %v487, inf
  %v744 = vsel %vm743, %v487, %v742
  %vm745 = vcmp.eq.f32.partialorder %v487, 0.0
  %v746 = vand.u32 %v487, 2147483648
  %v747 = vsel %vm745, %v746, %v744
  %v748 = vrsqrt.pop %v488
  %v749 = vmul.f32 %v488, %v748
  %vm750 = vcmp.eq.f32.partialorder %v488, inf
  %v751 = vsel %vm750, %v488, %v749
  %vm752 = vcmp.eq.f32.partialorder %v488, 0.0
  %v753 = vand.u32 %v488, 2147483648
  %v754 = vsel %vm752, %v753, %v751
  %vm755 = vcmask 523264
  %v756 = vsel %vm755, %v495, 0.0
  %v757 = vsel %vm755, %v502, 0.0
  %v758 = vadd.f32 %v756, %v757
  %v759 = vsel %vm755, %v509, 0.0
  %v760 = vadd.f32 %v758, %v759
  %v761 = vsel %vm755, %v516, 0.0
  %v762 = vadd.f32 %v760, %v761
  %v763 = vsel %vm755, %v523, 0.0
  %v764 = vadd.f32 %v762, %v763
  %v765 = vsel %vm755, %v530, 0.0
  %v766 = vadd.f32 %v764, %v765
  %v767 = vsel %vm755, %v537, 0.0
  %v768 = vadd.f32 %v766, %v767
  %v769 = vsel %vm755, %v544, 0.0
  %v770 = vadd.f32 %v768, %v769
  %v771 = vsel %vm755, %v551, 0.0
  %v772 = vadd.f32 %v770, %v771
  %v773 = vsel %vm755, %v558, 0.0
  %v774 = vadd.f32 %v772, %v773
  %v775 = vsel %vm755, %v565, 0.0
  %v776 = vadd.f32 %v774, %v775
  %v777 = vsel %vm755, %v572, 0.0
  %v778 = vadd.f32 %v776, %v777
  %v779 = vsel %vm755, %v579, 0.0
  %v780 = vadd.f32 %v778, %v779
  %v781 = vsel %vm755, %v586, 0.0
  %v782 = vadd.f32 %v780, %v781
  %v783 = vsel %vm755, %v593, 0.0
  %v784 = vadd.f32 %v782, %v783
  %v785 = vsel %vm755, %v600, 0.0
  %v786 = vadd.f32 %v784, %v785
  %v787 = vsel %vm755, %v607, 0.0
  %v788 = vadd.f32 %v786, %v787
  %v789 = vsel %vm755, %v614, 0.0
  %v790 = vadd.f32 %v788, %v789
  %v791 = vsel %vm755, %v621, 0.0
  %v792 = vadd.f32 %v790, %v791
  %v793 = vsel %vm755, %v628, 0.0
  %v794 = vadd.f32 %v792, %v793
  %v795 = vsel %vm755, %v635, 0.0
  %v796 = vadd.f32 %v794, %v795
  %v797 = vsel %vm755, %v642, 0.0
  %v798 = vadd.f32 %v796, %v797
  %v799 = vsel %vm755, %v649, 0.0
  %v800 = vadd.f32 %v798, %v799
  %v801 = vsel %vm755, %v656, 0.0
  %v802 = vadd.f32 %v800, %v801
  %v803 = vsel %vm755, %v663, 0.0
  %v804 = vadd.f32 %v802, %v803
  %v805 = vsel %vm755, %v670, 0.0
  %v806 = vadd.f32 %v804, %v805
  %v807 = vsel %vm755, %v677, 0.0
  %v808 = vadd.f32 %v806, %v807
  %v809 = vsel %vm755, %v684, 0.0
  %v810 = vadd.f32 %v808, %v809
  %v811 = vsel %vm755, %v691, 0.0
  %v812 = vadd.f32 %v810, %v811
  %v813 = vsel %vm755, %v698, 0.0
  %v814 = vadd.f32 %v812, %v813
  %v815 = vsel %vm755, %v705, 0.0
  %v816 = vadd.f32 %v814, %v815
  %v817 = vsel %vm755, %v712, 0.0
  %v818 = vadd.f32 %v816, %v817
  %v819 = vsel %vm755, %v719, 0.0
  %v820 = vadd.f32 %v818, %v819
  %v821 = vsel %vm755, %v726, 0.0
  %v822 = vadd.f32 %v820, %v821
  %v823 = vsel %vm755, %v733, 0.0
  %v824 = vadd.f32 %v822, %v823
  %v825 = vsel %vm755, %v740, 0.0
  %v826 = vadd.f32 %v824, %v825
  %v827 = vsel %vm755, %v747, 0.0
  %v828 = vadd.f32 %v826, %v827
  %v829 = vsel %vm755, %v754, 0.0
  %v830 = vadd.f32 %v828, %v829
  %831 = vst.msk [vmem:[%s2] sm:$0xff] %vm755, %v830
  // Predicated region
  $region10: #{alex11_loss.1} parent=0 // pred_check
    _
  $region11: #{alex11_loss.1} parent=0 // pred_check_branch
    %833 = sbr.rel (0) target = $region13
  $region12: #{alex11_loss.1} parent=0 // pred_region
    _
  $region13: #{alex11_loss.1} parent=0 // pred_fallthru
    _
  // Predicated region
  $region14: #{alex11_loss.1} parent=0 // pred_check
    _
  $region15: #{alex11_loss.1} parent=0 // pred_check_branch
    %835 = sbr.rel (0) target = $region17
  $region16: #{alex11_loss.1} parent=0 // pred_region
    _
  $region17: #{alex11_loss.1} parent=0 // pred_fallthru
    _

</llo_original>
